<compile_context>
chip_gen: v7x
topology: tpu7x:2x2x1
jax: 0.10.0
libtpu: 0.0.40
codegen_flags: <defaults>
</compile_context>

<pallas_src>
import functools

import jax
import jax.numpy as jnp
from jax.experimental import pallas as pl
from jax.experimental.pallas import tpu as pltpu


def _round_up(n, m):
    return ((n + m - 1) // m) * m


def textcnn_kernel(x_ref, w_ref, b_ref, mask_ref, fcw_ref, fcb_ref, out_ref):
    """Fused TextCNN forward for one batch tile.

    x_ref:    (Bb, L_pad, D)   bf16, zero-padded sequence
    w_ref:    (R_max, D, NCoP) bf16, all conv weights stacked (zero outside window)
    b_ref:    (1, NCoP)        f32, all conv biases (zero in padded lanes)
    mask_ref: (T_pad, NCoP)    f32, 1.0 where time position t is valid for a column
    fcw_ref:  (NCoP, CP)       bf16, fc weight (transposed, zero-padded)
    fcb_ref:  (1, CP)          f32, fc bias (zero-padded)
    out_ref:  (Bb, CP)         f32, lane-dense logits (valid classes in [:, :C])
    """
    Bb, _, D = x_ref.shape
    R_max, _, NCoP = w_ref.shape
    T_pad = mask_ref.shape[0]

    # Convolution as R_max sublane-shifted matmuls accumulated in f32:
    #   conv[b, t, :] = sum_r x[b, t+r, :] @ W[r]
    # x is read from HBM exactly once; the shifts are cheap VMEM slices.
    acc = jnp.zeros((Bb * T_pad, NCoP), jnp.float32)
    for r in range(R_max):  # static unroll (R_max = 5)
        xs = x_ref[:, r:r + T_pad, :].reshape(Bb * T_pad, D)
        acc = acc + jnp.dot(xs, w_ref[r], preferred_element_type=jnp.float32)

    conv = jnp.maximum(acc + b_ref[...], 0.0)                    # bias + ReLU (f32)
    # Zero invalid time positions (per kernel size / padded rows); since ReLU
    # output >= 0 this cannot change the max-over-time result.
    conv = conv.reshape(Bb, T_pad, NCoP) * mask_ref[...][None]
    feat = jnp.max(conv, axis=1)                                 # (Bb, NCoP)

    # Final classifier folded into the lane-padded matmul; lane-dense store.
    out_ref[...] = (
        jnp.dot(feat.astype(fcw_ref.dtype), fcw_ref[...],
                preferred_element_type=jnp.float32)
        + fcb_ref[...]
    )


def _fused_textcnn_call(x_pad, w_all, b_all, mask, fcw, fcb, block_b=None):
    B, L_pad, D = x_pad.shape
    R_max, _, NCoP = w_all.shape
    T_pad = mask.shape[0]
    CP = fcw.shape[1]
    if block_b is None:
        block_b = B  # whole batch in one tile; use a multiple of 8 for large B
    grid = (pl.cdiv(B, block_b),)

    return pl.pallas_call(
        textcnn_kernel,
        out_shape=jax.ShapeDtypeStruct((B, CP), jnp.float32),
        grid=grid,
        in_specs=[
            pl.BlockSpec((block_b, L_pad, D), lambda i: (i, 0, 0)),   # streamed
            pl.BlockSpec((R_max, D, NCoP), lambda i: (0, 0, 0)),      # resident
            pl.BlockSpec((1, NCoP), lambda i: (0, 0)),
            pl.BlockSpec((T_pad, NCoP), lambda i: (0, 0)),
            pl.BlockSpec((NCoP, CP), lambda i: (0, 0)),
            pl.BlockSpec((1, CP), lambda i: (0, 0)),
        ],
        out_specs=pl.BlockSpec((block_b, CP), lambda i: (i, 0)),
        compiler_params=pltpu.CompilerParams(
            dimension_semantics=("parallel",),
        ),
    )(x_pad, w_all, b_all, mask, fcw, fcb)


def prepare_params(conv_params, fc_w, fc_b, seq_len, lane=128):
    """One-time layout preparation (hoisted out of the forward pass).

    conv_params: list of (w (Co, 1, R, D) torch layout, b (Co,)).
    fc_w: (C, len(Rs)*Co) torch layout, fc_b: (C,).
    Returns bf16/f32 arrays ready for model_forward.
    """
    Rs = [int(w.shape[2]) for w, _ in conv_params]
    Co = int(conv_params[0][0].shape[0])
    D = int(conv_params[0][0].shape[3])
    R_max, R_min = max(Rs), min(Rs)
    NCo = len(Rs) * Co
    NCoP = _round_up(NCo, lane)               # lane-dense conv output width
    C = int(fc_w.shape[0])
    CP = _round_up(C, lane)                   # lane-dense logit width
    T = seq_len - R_min + 1                   # unfold positions covering all sizes
    T_pad = _round_up(T, 8)                   # sublane-aligned time axis

    w_all = jnp.zeros((R_max, D, NCoP), jnp.float32)
    b_all = jnp.zeros((1, NCoP), jnp.float32)
    mask = jnp.zeros((T_pad, NCoP), jnp.float32)
    t = jnp.arange(T_pad)
    for k, ((w, b), R) in enumerate(zip(conv_params, Rs)):
        lo, hi = k * Co, (k + 1) * Co
        wk = jnp.transpose(w[:, 0], (1, 2, 0))               # (R, D, Co)
        w_all = w_all.at[:R, :, lo:hi].set(wk)
        b_all = b_all.at[0, lo:hi].set(b)
        valid = (t < (seq_len - R + 1)).astype(jnp.float32)  # valid conv positions
        mask = mask.at[:, lo:hi].set(jnp.broadcast_to(valid[:, None], (T_pad, Co)))

    fcw = jnp.zeros((NCoP, CP), jnp.float32).at[:NCo, :C].set(fc_w.T)
    fcb = jnp.zeros((1, CP), jnp.float32).at[0, :C].set(fc_b)

    return (w_all.astype(jnp.bfloat16), b_all, mask,
            fcw.astype(jnp.bfloat16), fcb)


@functools.partial(jax.jit, static_argnames=("n_classes",))
def model_forward(x, w_all, b_all, mask, fcw, fcb, n_classes=2):
    """Full TextCNN forward. x: (B, L, D) f32. Returns logits (B, n_classes) f32."""
    B, L, D = x.shape
    R_max = w_all.shape[0]
    T_pad = mask.shape[0]
    L_pad = _round_up(T_pad + R_max - 1, 8)                   # sublane-aligned length
    x_pad = jnp.pad(x, ((0, 0), (0, L_pad - L), (0, 0))).astype(jnp.bfloat16)
    out = _fused_textcnn_call(x_pad, w_all, b_all, mask, fcw, fcb)
    return out[:, :n_classes]


def _reference_forward(x, conv_params, fc_w, fc_b):
    """Pure-JAX f32 reference mirroring the PyTorch forward."""
    B, L, D = x.shape
    feats = []
    for w, b in conv_params:
        Co, _, R, _ = w.shape
        Lout = L - R + 1
        unf = jnp.stack(
            [x[:, t:t + R, :].reshape(B, R * D) for t in range(Lout)], axis=1
        )
        conv = jnp.einsum('btk,ck->btc', unf, w.reshape(Co, R * D)) + b
        conv = jnp.maximum(conv, 0.0)
        feats.append(jnp.max(conv, axis=1))
    feat = jnp.concatenate(feats, axis=1)
    return feat @ fc_w.T + fc_b


if __name__ == "__main__":
    # args: embed_dim=32, kernel_num=8, kernel_sizes=(3,4,5); C=2 classes.
    B, L, D = 2, 16, 32
    Co = 8
    Rs = (3, 4, 5)
    C = 2

    key = jax.random.PRNGKey(0)
    keys = jax.random.split(key, 2 * len(Rs) + 3)

    x = jax.random.normal(keys[0], (B, L, D), dtype=jnp.float32)

    conv_params = []
    for i, R in enumerate(Rs):
        w = 0.1 * jax.random.normal(keys[1 + 2 * i], (Co, 1, R, D), dtype=jnp.float32)
        b = 0.1 * jax.random.normal(keys[2 + 2 * i], (Co,), dtype=jnp.float32)
        conv_params.append((w, b))

    fc_w = 0.1 * jax.random.normal(keys[-2], (C, len(Rs) * Co), dtype=jnp.float32)
    fc_b = 0.1 * jax.random.normal(keys[-1], (C,), dtype=jnp.float32)

    # One-time layout prep (weight stacking / padding / transposes hoisted out).
    params = prepare_params(conv_params, fc_w, fc_b, L)

    logit = model_forward(x, *params, n_classes=C)
    jax.block_until_ready(logit)

    ref = _reference_forward(x, conv_params, fc_w, fc_b)
    assert logit.shape == (B, C)
    # Tolerance loosened vs. a pure-f32 path because matmul operands are bf16.
    assert jnp.allclose(logit, ref, atol=5e-2, rtol=5e-2), (logit, ref)

    print("KERNEL_OK")
</pallas_src>

<mosaic_0001>
module attributes {stable_mosaic.version = 11 : i64} {
  func.func @textcnn_kernel(%arg0: i32, %arg1: memref<2x24x32xbf16, #tpu.memory_space<vmem>>, %arg2: memref<5x32x128xbf16, #tpu.memory_space<vmem>>, %arg3: memref<1x128xf32, #tpu.memory_space<vmem>>, %arg4: memref<16x128xf32, #tpu.memory_space<vmem>>, %arg5: memref<128x128xbf16, #tpu.memory_space<vmem>>, %arg6: memref<1x128xf32, #tpu.memory_space<vmem>>, %arg7: memref<2x128xf32, #tpu.memory_space<vmem>>) attributes {dimension_semantics = [#tpu.dimension_semantics<parallel>], iteration_bounds = array<i64: 1>, scalar_prefetch = 0 : i64, scratch_operands = 0 : i64, tpu.core_type = #tpu.core_type<tc>, window_params = [{transform_indices = @transform_0, window_bounds = array<i64: 2, 24, 32>}, {pipeline_mode = #tpu.pipeline_mode<synchronous>, transform_indices = @transform_1, window_bounds = array<i64: 5, 32, 128>}, {pipeline_mode = #tpu.pipeline_mode<synchronous>, transform_indices = @transform_2, window_bounds = array<i64: 1, 128>}, {pipeline_mode = #tpu.pipeline_mode<synchronous>, transform_indices = @transform_3, window_bounds = array<i64: 16, 128>}, {pipeline_mode = #tpu.pipeline_mode<synchronous>, transform_indices = @transform_4, window_bounds = array<i64: 128, 128>}, {pipeline_mode = #tpu.pipeline_mode<synchronous>, transform_indices = @transform_5, window_bounds = array<i64: 1, 128>}, {transform_indices = @transform_6, window_bounds = array<i64: 2, 128>}]} {
    %cst = arith.constant 0.000000e+00 : f32
    %0 = vector.broadcast %cst : f32 to vector<32x128xf32>
    %c0 = arith.constant 0 : index
    %c0_0 = arith.constant 0 : index
    %c0_1 = arith.constant 0 : index
    %1 = vector.load %arg1[%c0, %c0_0, %c0_1] : memref<2x24x32xbf16, #tpu.memory_space<vmem>>, vector<2x16x32xbf16>
    %2 = vector.shape_cast %1 : vector<2x16x32xbf16> to vector<32x32xbf16>
    %c0_2 = arith.constant 0 : index
    %c0_3 = arith.constant 0 : index
    %c0_4 = arith.constant 0 : index
    %3 = vector.load %arg2[%c0_2, %c0_3, %c0_4] : memref<5x32x128xbf16, #tpu.memory_space<vmem>>, vector<1x32x128xbf16>
    %4 = vector.shape_cast %3 : vector<1x32x128xbf16> to vector<32x128xbf16>
    %cst_5 = arith.constant dense<0.000000e+00> : vector<32x128xf32>
    %5 = tpu.matmul %2, %4, %cst_5 {dimension_numbers = #tpu.dot_dimension_numbers<[1], [0], [0], [1], [0, 0, 1, 1], [], []>} : vector<32x32xbf16>, vector<32x128xbf16>, vector<32x128xf32> -> vector<32x128xf32>
    %6 = arith.addf %0, %5 : vector<32x128xf32>
    %c0_6 = arith.constant 0 : index
    %c1 = arith.constant 1 : index
    %c0_7 = arith.constant 0 : index
    %7 = vector.load %arg1[%c0_6, %c1, %c0_7] : memref<2x24x32xbf16, #tpu.memory_space<vmem>>, vector<2x16x32xbf16>
    %8 = vector.shape_cast %7 : vector<2x16x32xbf16> to vector<32x32xbf16>
    %c1_8 = arith.constant 1 : index
    %c0_9 = arith.constant 0 : index
    %c0_10 = arith.constant 0 : index
    %9 = vector.load %arg2[%c1_8, %c0_9, %c0_10] : memref<5x32x128xbf16, #tpu.memory_space<vmem>>, vector<1x32x128xbf16>
    %10 = vector.shape_cast %9 : vector<1x32x128xbf16> to vector<32x128xbf16>
    %cst_11 = arith.constant dense<0.000000e+00> : vector<32x128xf32>
    %11 = tpu.matmul %8, %10, %cst_11 {dimension_numbers = #tpu.dot_dimension_numbers<[1], [0], [0], [1], [0, 0, 1, 1], [], []>} : vector<32x32xbf16>, vector<32x128xbf16>, vector<32x128xf32> -> vector<32x128xf32>
    %12 = arith.addf %6, %11 : vector<32x128xf32>
    %c0_12 = arith.constant 0 : index
    %c2 = arith.constant 2 : index
    %c0_13 = arith.constant 0 : index
    %13 = vector.load %arg1[%c0_12, %c2, %c0_13] : memref<2x24x32xbf16, #tpu.memory_space<vmem>>, vector<2x16x32xbf16>
    %14 = vector.shape_cast %13 : vector<2x16x32xbf16> to vector<32x32xbf16>
    %c2_14 = arith.constant 2 : index
    %c0_15 = arith.constant 0 : index
    %c0_16 = arith.constant 0 : index
    %15 = vector.load %arg2[%c2_14, %c0_15, %c0_16] : memref<5x32x128xbf16, #tpu.memory_space<vmem>>, vector<1x32x128xbf16>
    %16 = vector.shape_cast %15 : vector<1x32x128xbf16> to vector<32x128xbf16>
    %cst_17 = arith.constant dense<0.000000e+00> : vector<32x128xf32>
    %17 = tpu.matmul %14, %16, %cst_17 {dimension_numbers = #tpu.dot_dimension_numbers<[1], [0], [0], [1], [0, 0, 1, 1], [], []>} : vector<32x32xbf16>, vector<32x128xbf16>, vector<32x128xf32> -> vector<32x128xf32>
    %18 = arith.addf %12, %17 : vector<32x128xf32>
    %c0_18 = arith.constant 0 : index
    %c3 = arith.constant 3 : index
    %c0_19 = arith.constant 0 : index
    %19 = vector.load %arg1[%c0_18, %c3, %c0_19] : memref<2x24x32xbf16, #tpu.memory_space<vmem>>, vector<2x16x32xbf16>
    %20 = vector.shape_cast %19 : vector<2x16x32xbf16> to vector<32x32xbf16>
    %c3_20 = arith.constant 3 : index
    %c0_21 = arith.constant 0 : index
    %c0_22 = arith.constant 0 : index
    %21 = vector.load %arg2[%c3_20, %c0_21, %c0_22] : memref<5x32x128xbf16, #tpu.memory_space<vmem>>, vector<1x32x128xbf16>
    %22 = vector.shape_cast %21 : vector<1x32x128xbf16> to vector<32x128xbf16>
    %cst_23 = arith.constant dense<0.000000e+00> : vector<32x128xf32>
    %23 = tpu.matmul %20, %22, %cst_23 {dimension_numbers = #tpu.dot_dimension_numbers<[1], [0], [0], [1], [0, 0, 1, 1], [], []>} : vector<32x32xbf16>, vector<32x128xbf16>, vector<32x128xf32> -> vector<32x128xf32>
    %24 = arith.addf %18, %23 : vector<32x128xf32>
    %c0_24 = arith.constant 0 : index
    %c4 = arith.constant 4 : index
    %c0_25 = arith.constant 0 : index
    %25 = vector.load %arg1[%c0_24, %c4, %c0_25] : memref<2x24x32xbf16, #tpu.memory_space<vmem>>, vector<2x16x32xbf16>
    %26 = vector.shape_cast %25 : vector<2x16x32xbf16> to vector<32x32xbf16>
    %c4_26 = arith.constant 4 : index
    %c0_27 = arith.constant 0 : index
    %c0_28 = arith.constant 0 : index
    %27 = vector.load %arg2[%c4_26, %c0_27, %c0_28] : memref<5x32x128xbf16, #tpu.memory_space<vmem>>, vector<1x32x128xbf16>
    %28 = vector.shape_cast %27 : vector<1x32x128xbf16> to vector<32x128xbf16>
    %cst_29 = arith.constant dense<0.000000e+00> : vector<32x128xf32>
    %29 = tpu.matmul %26, %28, %cst_29 {dimension_numbers = #tpu.dot_dimension_numbers<[1], [0], [0], [1], [0, 0, 1, 1], [], []>} : vector<32x32xbf16>, vector<32x128xbf16>, vector<32x128xf32> -> vector<32x128xf32>
    %30 = arith.addf %24, %29 : vector<32x128xf32>
    %c0_30 = arith.constant 0 : index
    %c0_31 = arith.constant 0 : index
    %31 = vector.load %arg3[%c0_30, %c0_31] : memref<1x128xf32, #tpu.memory_space<vmem>>, vector<1x128xf32>
    %32 = vector.broadcast %31 : vector<1x128xf32> to vector<32x128xf32>
    %33 = arith.addf %30, %32 : vector<32x128xf32>
    %cst_32 = arith.constant 0.000000e+00 : f32
    %34 = vector.broadcast %cst_32 : f32 to vector<32x128xf32>
    %35 = arith.maximumf %33, %34 : vector<32x128xf32>
    %36 = vector.shape_cast %35 : vector<32x128xf32> to vector<2x16x128xf32>
    %c0_33 = arith.constant 0 : index
    %c0_34 = arith.constant 0 : index
    %37 = vector.load %arg4[%c0_33, %c0_34] : memref<16x128xf32, #tpu.memory_space<vmem>>, vector<16x128xf32>
    %38 = vector.shape_cast %37 : vector<16x128xf32> to vector<1x16x128xf32>
    %39 = vector.broadcast %38 : vector<1x16x128xf32> to vector<2x16x128xf32>
    %40 = arith.mulf %36, %39 : vector<2x16x128xf32>
    %cst_35 = arith.constant dense<0xFF800000> : vector<2x128xf32>
    %41 = vector.multi_reduction <maximumf>, %40, %cst_35 [1] : vector<2x16x128xf32> to vector<2x128xf32>
    %42 = arith.truncf %41 : vector<2x128xf32> to vector<2x128xbf16>
    %c0_36 = arith.constant 0 : index
    %c0_37 = arith.constant 0 : index
    %43 = vector.load %arg5[%c0_36, %c0_37] : memref<128x128xbf16, #tpu.memory_space<vmem>>, vector<128x128xbf16>
    %cst_38 = arith.constant dense<0.000000e+00> : vector<2x128xf32>
    %44 = tpu.matmul %42, %43, %cst_38 {dimension_numbers = #tpu.dot_dimension_numbers<[1], [0], [0], [1], [0, 0, 1, 1], [], []>} : vector<2x128xbf16>, vector<128x128xbf16>, vector<2x128xf32> -> vector<2x128xf32>
    %c0_39 = arith.constant 0 : index
    %c0_40 = arith.constant 0 : index
    %45 = vector.load %arg6[%c0_39, %c0_40] : memref<1x128xf32, #tpu.memory_space<vmem>>, vector<1x128xf32>
    %46 = vector.broadcast %45 : vector<1x128xf32> to vector<2x128xf32>
    %47 = arith.addf %44, %46 : vector<2x128xf32>
    %c0_41 = arith.constant 0 : index
    %c0_42 = arith.constant 0 : index
    %48 = vector.load %arg7[%c0_41, %c0_42] : memref<2x128xf32, #tpu.memory_space<vmem>>, vector<2x128xf32>
    tpu.vector_store %arg7[%c0_41, %c0_42], %47 {strides = array<i32>} : memref<2x128xf32, #tpu.memory_space<vmem>>, vector<2x128xf32>,
    return
  }
  func.func @transform_0(%arg0: i32) -> (i32, i32, i32) {
    %c0_i32 = arith.constant 0 : i32
    %c0_i32_0 = arith.constant 0 : i32
    %c0_i32_1 = arith.constant 0 : i32
    return %arg0, %c0_i32, %c0_i32_0 : i32, i32, i32
  }
  func.func @transform_1(%arg0: i32) -> (i32, i32, i32) {
    %c0_i32 = arith.constant 0 : i32
    %c0_i32_0 = arith.constant 0 : i32
    %c0_i32_1 = arith.constant 0 : i32
    %c0_i32_2 = arith.constant 0 : i32
    return %c0_i32, %c0_i32_0, %c0_i32_1 : i32, i32, i32
  }
  func.func @transform_2(%arg0: i32) -> (i32, i32) {
    %c0_i32 = arith.constant 0 : i32
    %c0_i32_0 = arith.constant 0 : i32
    %c0_i32_1 = arith.constant 0 : i32
    return %c0_i32, %c0_i32_0 : i32, i32
  }
  func.func @transform_3(%arg0: i32) -> (i32, i32) {
    %c0_i32 = arith.constant 0 : i32
    %c0_i32_0 = arith.constant 0 : i32
    %c0_i32_1 = arith.constant 0 : i32
    return %c0_i32, %c0_i32_0 : i32, i32
  }
  func.func @transform_4(%arg0: i32) -> (i32, i32) {
    %c0_i32 = arith.constant 0 : i32
    %c0_i32_0 = arith.constant 0 : i32
    %c0_i32_1 = arith.constant 0 : i32
    return %c0_i32, %c0_i32_0 : i32, i32
  }
  func.func @transform_5(%arg0: i32) -> (i32, i32) {
    %c0_i32 = arith.constant 0 : i32
    %c0_i32_0 = arith.constant 0 : i32
    %c0_i32_1 = arith.constant 0 : i32
    return %c0_i32, %c0_i32_0 : i32, i32
  }
  func.func @transform_6(%arg0: i32) -> (i32, i32) {
    %c0_i32 = arith.constant 0 : i32
    %c0_i32_0 = arith.constant 0 : i32
    return %arg0, %c0_i32 : i32, i32
  }
}

</mosaic_0001>

<llo_original>
// kernel: model_forward.1
$region0: #{model_forward.1}
  #allocation0 [shape = 'u32[]', space=smem, size = 0x4, offset = 0x4, fixed_abs, tag = 'smem constant byte address 0x4 - core index']
  #allocation1 [shape = 'u32[144,128]{1,0:T(1,128)}', space=vmem, size = 0x12000, scoped, tag = 'internal scratch']
  %s0 = inlined_call_operand.vmem [shape: bf16[2,24,32], index: 0, kind: input, shape index: {}]
  %s1 = inlined_call_operand.vmem [shape: bf16[5,32,128], index: 1, kind: input, shape index: {}]
  %s2 = inlined_call_operand.hbm [shape: f32[1,128], index: 2, kind: input, shape index: {}]
  %s3 = inlined_call_operand.vmem [shape: f32[16,128], index: 3, kind: input, shape index: {}]
  %s4 = inlined_call_operand.hbm [shape: bf16[128,128], index: 4, kind: input, shape index: {}]
  %s5 = inlined_call_operand.vmem [shape: f32[1,128], index: 5, kind: input, shape index: {}]
  %s6 = inlined_call_operand.hbm [shape: f32[2,128], index: 6, kind: output, shape index: {}]
  %s7 = sld [smem:[#allocation0]]
  $region42: #{model_forward.1} parent=0
    _
  %s9 = ssub.s32 1, %s7
  %s10 = scalar_select 0, %s9, %s7
  $region1: #{model_forward.1} parent=0
    #allocation2 [shape = 'u8[512]{0}', space=vmem, size = 0x400, scoped, tag = 'input window, operand 2, single buffered']
    #allocation3 [shape = 's32[1]{0}', space=sflag, size = 0x4, scoped, tag = 'scoped memory for model_forward.1']
    #allocation4 [shape = 's32[1]{0}', space=sflag, size = 0x4, scoped, tag = 'scoped memory for model_forward.1']
    #allocation5 [shape = 'u8[32768]{0}', space=vmem, size = 0x8000, scoped, tag = 'input window, operand 4, single buffered']
    #allocation6 [shape = 's32[1]{0}', space=sflag, size = 0x4, scoped, tag = 'scoped memory for model_forward.1']
    #allocation7 [shape = 'u8[1024]{0}', space=vmem, size = 0x400, scoped, tag = 'output window, operand 0, single buffered']
    %11 = vsyncpa [#allocation3], 0
    %12 = vsyncpa [#allocation6], 0
    %13 = vsyncpa [#allocation4], 0
    // Predicated region
    $region2: #{model_forward.1} parent=1 // pred_check
      _
    $region3: #{model_forward.1} parent=1 // pred_check_branch
      %15 = sbr.rel (0) target = $region5
    $region4: #{model_forward.1} parent=1 // pred_region
      _
    $region5: #{model_forward.1} parent=1 // pred_fallthru
      _
    // Predicated region
    $region6: #{model_forward.1} parent=1 // pred_check
      _
    $region7: #{model_forward.1} parent=1 // pred_check_branch
      %17 = sbr.rel (0) target = $region9
    $region8: #{model_forward.1} parent=1 // pred_region
      _
    $region9: #{model_forward.1} parent=1 // pred_fallthru
      _
    // Predicated region
    $region10: #{model_forward.1} parent=1 // pred_check
      _
    $region11: #{model_forward.1} parent=1 // pred_check_branch
      %19 = sbr.rel (0) target = $region13
    $region12: #{model_forward.1} parent=1 // pred_region
      %s21 = ssub.s32 16, 16
      %22 = vsyncadd [#allocation3], %s21
      %s24 = sshll.u32 [#allocation2], 4
      %s25 = int_to_ptr.vmem [resolvable:$true] %s24
      %27 = dma.hbm_to_vmem [thread:$0]  %s2, 16, %s25, [#allocation3]
    $region13: #{model_forward.1} parent=1 // pred_fallthru
      _
    // Predicated region
    $region14: #{model_forward.1} parent=1 // pred_check
      _
    $region15: #{model_forward.1} parent=1 // pred_check_branch
      %29 = sbr.rel (0) target = $region17
    $region16: #{model_forward.1} parent=1 // pred_region
      _
    $region17: #{model_forward.1} parent=1 // pred_fallthru
      _
    // Predicated region
    $region18: #{model_forward.1} parent=1 // pred_check
      _
    $region19: #{model_forward.1} parent=1 // pred_check_branch
      %31 = sbr.rel (0) target = $region21
    $region20: #{model_forward.1} parent=1 // pred_region
      %s33 = ssub.s32 1024, 1024
      %34 = vsyncadd [#allocation6], %s33
      %s35 = sshll.u32 [#allocation5], 4
      %s36 = int_to_ptr.vmem [resolvable:$true] %s35
      %41 = dma.hbm_to_vmem [thread:$0]  %s4, 1024, %s36, [#allocation6], 64, 64, 4
    $region21: #{model_forward.1} parent=1 // pred_fallthru
      _
    // Predicated region
    $region22: #{model_forward.1} parent=1 // pred_check
      _
    $region23: #{model_forward.1} parent=1 // pred_check_branch
      %43 = sbr.rel (0) target = $region25
    $region24: #{model_forward.1} parent=1 // pred_region
      _
    $region25: #{model_forward.1} parent=1 // pred_fallthru
      _
    // Predicated region
    $region26: #{model_forward.1} parent=1 // pred_check
      _
    $region27: #{model_forward.1} parent=1 // pred_check_branch
      %45 = sbr.rel (0) target = $region29
    $region28: #{model_forward.1} parent=1 // pred_region
      %46 = dma.done [#allocation3], 16
    $region29: #{model_forward.1} parent=1 // pred_fallthru
      _
    // Predicated region
    $region30: #{model_forward.1} parent=1 // pred_check
      _
    $region31: #{model_forward.1} parent=1 // pred_check_branch
      %48 = sbr.rel (0) target = $region33
    $region32: #{model_forward.1} parent=1 // pred_region
      %49 = dma.done [#allocation6], 1024
    $region33: #{model_forward.1} parent=1 // pred_fallthru
      _
    %v51 = vld [vmem:[%s0] sm:$0xf]
    %v52 = vld [vmem:[%s0 + $0x4] sm:$0xf]
    %v53 = vld [vmem:[%s0 + $0xc] sm:$0xf]
    %v54 = vld [vmem:[%s0 + $0x10] sm:$0xf]
    %v55 = vld [vmem:[%s1] sm:$0xf]
    %v56 = vld [vmem:[%s1 + $0x4] sm:$0xf]
    %v57 = vld [vmem:[%s1 + $0x8] sm:$0xf]
    %v58 = vld [vmem:[%s1 + $0xc] sm:$0xf]
    %v59 = vld [vmem:[%s0 + $0x8] sm:$0x1]
    %v60 = vld [vmem:[%s0 + $0x14] sm:$0x1]
    %vm61 = vsmask.f32 3328
    %vm62 = vsmask.f32 7440
    %vm63 = vmor %vm61, %vm62
    %v65 = vshrl.u32 %v51, 16
    %v67 = vrot.slane %v65, 4
    %v68 = vshll.u32 %v51, 16
    %v70 = vrot.slane %v68, 5
    %v71 = vor.u32 %v67, %v70
    %v72 = vrot.slane %v71, 4
    %v74 = vshll.u32 %v52, 16
    %v76 = vrot.slane %v74, 5
    %v77 = vsel %vm63, %v72, %v76
    %v78 = vshrl.u32 %v52, 16
    %v80 = vrot.slane %v78, 4
    %v81 = vor.u32 %v80, %v76
    %v82 = vrot.slane %v81, 4
    %v84 = vshll.u32 %v59, 16
    %v86 = vrot.slane %v84, 5
    %v87 = vsel %vm63, %v82, %v86
    %v89 = vshrl.u32 %v53, 16
    %v91 = vrot.slane %v89, 4
    %v92 = vshll.u32 %v53, 16
    %v94 = vrot.slane %v92, 5
    %v95 = vor.u32 %v91, %v94
    %v96 = vrot.slane %v95, 4
    %v98 = vshll.u32 %v54, 16
    %v100 = vrot.slane %v98, 5
    %v101 = vsel %vm63, %v96, %v100
    %v102 = vshrl.u32 %v54, 16
    %v104 = vrot.slane %v102, 4
    %v105 = vor.u32 %v104, %v100
    %v106 = vrot.slane %v105, 4
    %v108 = vshll.u32 %v60, 16
    %v110 = vrot.slane %v108, 5
    %v111 = vsel %vm63, %v106, %v110
    %s112 = scalar_lea.vmem %s1, 16
    %v113 = vld [vmem:[%s112] sm:$0xf]
    %v114 = vld [vmem:[%s112 + $0x4] sm:$0xf]
    %v115 = vld [vmem:[%s112 + $0x8] sm:$0xf]
    %v116 = vld [vmem:[%s112 + $0xc] sm:$0xf]
    %v117 = vunpack.c.l.b16 %v77
    %v118 = vunpack.c.l.b16 %v87
    %v119 = vunpack.c.l.b16 %v101
    %v120 = vunpack.c.l.b16 %v111
    %v121 = vpack.c.b16 %v118, %v117
    %v122 = vpack.c.b16 %v120, %v119
    %v127 = vunpack.c.l.b16 %v113
    %v128 = vunpack.c.l.b16 %v114
    %v129 = vunpack.c.l.b16 %v115
    %v130 = vunpack.c.l.b16 %v116
    %v131 = vpack.c.b16 %v128, %v127
    %v132 = vpack.c.b16 %v130, %v129
    %vm135 = vcmask 261120
    %v137 = vsel %vm135, %v121, 0
    %v140 = vsel %vm135, %v122, 0
    %142 = vmatprep.subr.bf16.mxu0 0
    %143 = vmatpush1.bf16.msra.mxu0 %v131
    %144 = vmatprep.subr.bf16.mxu0 0
    %145 = vmatpush1.bf16.msra.mxu0 %v132
    %146 = vmatprep.subr.bf16.mxu0 0
    %147 = vmatpush1.bf16.msra.mxu0 0
    %148 = vmatprep.subr.bf16.mxu0 0
    %149 = vmatpush1.bf16.msra.mxu0 0
    %150 = vmatprep.subr.bf16.mxu0 0
    %151 = vmatpush1.bf16.msra.mxu0 0
    %152 = vmatprep.subr.bf16.mxu0 0
    %153 = vmatpush1.bf16.msra.mxu0 0
    %154 = vmatprep.subr.bf16.mxu0 0
    %155 = vmatpush1.bf16.msra.mxu0 0
    %156 = vmatprep.subr.bf16.mxu0 0
    %157 = vmatpush1.bf16.msra.mxu0 0
    %158 = vmatprep.subr.bf16.mxu0 0
    %159 = vmatpush1.bf16.msra.mxu0 0
    %160 = vmatprep.subr.bf16.mxu0 0
    %161 = vmatpush1.bf16.msra.mxu0 0
    %162 = vmatprep.subr.bf16.mxu0 0
    %163 = vmatpush1.bf16.msra.mxu0 0
    %164 = vmatprep.subr.bf16.mxu0 0
    %165 = vmatpush1.bf16.msra.mxu0 0
    %166 = vmatprep.subr.bf16.mxu0 0
    %167 = vmatpush1.bf16.msra.mxu0 0
    %168 = vmatprep.subr.bf16.mxu0 0
    %169 = vmatpush1.bf16.msra.mxu0 0
    %170 = vmatprep.subr.bf16.mxu0 0
    %171 = vmatpush1.bf16.msra.mxu0 0
    %172 = vmatprep.subr.bf16.mxu0 0
    %173 = vmatpush1.bf16.msra.mxu0 0
    %174 = vmatprep.mubr.bf16.mxu0 0
    %175 = vmatmul.mubr.bf16.gmra.mrb[0].mxu0 %v137
    %v176 = vpop.f32.mrb[0].mxu0
    %v177 = vadd.f32 0.0, %v176
    %v178 = vpop.f32.mrb[0].mxu0
    %v179 = vpop.f32.mrb[0].mxu0
    %v180 = vadd.f32 0.0, %v179
    %v181 = vpop.f32.mrb[0].mxu0
    %182 = vmatprep.mubr.bf16.mxu0 0
    %183 = vmatmul.mubr.bf16.gmra.mrb[0].mxu0 %v140
    %v184 = vpop.f32.mrb[0].mxu0
    %v185 = vadd.f32 0.0, %v184
    %v186 = vpop.f32.mrb[0].mxu0
    %v187 = vpop.f32.mrb[0].mxu0
    %v188 = vadd.f32 0.0, %v187
    %v189 = vpop.f32.mrb[0].mxu0
    %190 = vdwg.mxu0
    %v195 = vunpack.c.l.b16 %v51
    %v196 = vunpack.c.l.b16 %v52
    %v197 = vunpack.c.l.b16 %v53
    %v198 = vunpack.c.l.b16 %v54
    %v199 = vpack.c.b16 %v196, %v195
    %v200 = vpack.c.b16 %v198, %v197
    %v205 = vunpack.c.l.b16 %v55
    %v206 = vunpack.c.l.b16 %v56
    %v207 = vunpack.c.l.b16 %v57
    %v208 = vunpack.c.l.b16 %v58
    %v209 = vpack.c.b16 %v206, %v205
    %v210 = vpack.c.b16 %v208, %v207
    %v214 = vsel %vm135, %v199, 0
    %v217 = vsel %vm135, %v200, 0
    %219 = vmatprep.subr.bf16.mxu0 0
    %220 = vmatpush1.bf16.msra.mxu0 %v209
    %221 = vmatprep.subr.bf16.mxu0 0
    %222 = vmatpush1.bf16.msra.mxu0 %v210
    %223 = vmatprep.subr.bf16.mxu0 0
    %224 = vmatpush1.bf16.msra.mxu0 0
    %225 = vmatprep.subr.bf16.mxu0 0
    %226 = vmatpush1.bf16.msra.mxu0 0
    %227 = vmatprep.subr.bf16.mxu0 0
    %228 = vmatpush1.bf16.msra.mxu0 0
    %229 = vmatprep.subr.bf16.mxu0 0
    %230 = vmatpush1.bf16.msra.mxu0 0
    %231 = vmatprep.subr.bf16.mxu0 0
    %232 = vmatpush1.bf16.msra.mxu0 0
    %233 = vmatprep.subr.bf16.mxu0 0
    %234 = vmatpush1.bf16.msra.mxu0 0
    %235 = vmatprep.subr.bf16.mxu0 0
    %236 = vmatpush1.bf16.msra.mxu0 0
    %237 = vmatprep.subr.bf16.mxu0 0
    %238 = vmatpush1.bf16.msra.mxu0 0
    %239 = vmatprep.subr.bf16.mxu0 0
    %240 = vmatpush1.bf16.msra.mxu0 0
    %241 = vmatprep.subr.bf16.mxu0 0
    %242 = vmatpush1.bf16.msra.mxu0 0
    %243 = vmatprep.subr.bf16.mxu0 0
    %244 = vmatpush1.bf16.msra.mxu0 0
    %245 = vmatprep.subr.bf16.mxu0 0
    %246 = vmatpush1.bf16.msra.mxu0 0
    %247 = vmatprep.subr.bf16.mxu0 0
    %248 = vmatpush1.bf16.msra.mxu0 0
    %249 = vmatprep.subr.bf16.mxu0 0
    %250 = vmatpush1.bf16.msra.mxu0 0
    %251 = vmatprep.mubr.bf16.mxu0 0
    %252 = vmatmul.mubr.bf16.gmra.mrb[0].mxu0 %v214
    %v253 = vpop.f32.mrb[0].mxu0
    %v254 = vadd.f32 %v177, %v253
    %v255 = vpop.f32.mrb[0].mxu0
    %v256 = vpop.f32.mrb[0].mxu0
    %v257 = vadd.f32 %v180, %v256
    %v258 = vpop.f32.mrb[0].mxu0
    %259 = vmatprep.mubr.bf16.mxu0 0
    %260 = vmatmul.mubr.bf16.gmra.mrb[0].mxu0 %v217
    %v261 = vpop.f32.mrb[0].mxu0
    %v262 = vadd.f32 %v185, %v261
    %v263 = vpop.f32.mrb[0].mxu0
    %v264 = vpop.f32.mrb[0].mxu0
    %v265 = vadd.f32 %v188, %v264
    %v266 = vpop.f32.mrb[0].mxu0
    %267 = vdwg.mxu0
    %v268 = vld [vmem:[%s0] sm:$0xe]
    %v269 = vld [vmem:[%s0 + $0xc] sm:$0xe]
    %vm274 = vcmask 1042432
    %vm275 = vcmask 1046532
    %vm276 = vmor %vm274, %vm275
    %v277 = vrot.slane %v268, 5
    %v278 = vrot.slane %v277, 4
    %v279 = vrot.slane %v52, 5
    %v280 = vsel %vm276, %v278, %v279
    %v281 = vrot.slane %v279, 4
    %v282 = vrot.slane %v59, 5
    %v283 = vsel %vm276, %v281, %v282
    %v284 = vrot.slane %v269, 5
    %v285 = vrot.slane %v284, 4
    %v286 = vrot.slane %v54, 5
    %v287 = vsel %vm276, %v285, %v286
    %v288 = vrot.slane %v286, 4
    %v289 = vrot.slane %v60, 5
    %v290 = vsel %vm276, %v288, %v289
    %s291 = scalar_lea.vmem %s1, 32
    %v292 = vld [vmem:[%s291] sm:$0xf]
    %v293 = vld [vmem:[%s291 + $0x4] sm:$0xf]
    %v294 = vld [vmem:[%s291 + $0x8] sm:$0xf]
    %v295 = vld [vmem:[%s291 + $0xc] sm:$0xf]
    %v296 = vunpack.c.l.b16 %v280
    %v297 = vunpack.c.l.b16 %v283
    %v298 = vunpack.c.l.b16 %v287
    %v299 = vunpack.c.l.b16 %v290
    %v300 = vpack.c.b16 %v297, %v296
    %v301 = vpack.c.b16 %v299, %v298
    %v306 = vunpack.c.l.b16 %v292
    %v307 = vunpack.c.l.b16 %v293
    %v308 = vunpack.c.l.b16 %v294
    %v309 = vunpack.c.l.b16 %v295
    %v310 = vpack.c.b16 %v307, %v306
    %v311 = vpack.c.b16 %v309, %v308
    %v315 = vsel %vm135, %v300, 0
    %v318 = vsel %vm135, %v301, 0
    %320 = vmatprep.subr.bf16.mxu0 0
    %321 = vmatpush1.bf16.msra.mxu0 %v310
    %322 = vmatprep.subr.bf16.mxu0 0
    %323 = vmatpush1.bf16.msra.mxu0 %v311
    %324 = vmatprep.subr.bf16.mxu0 0
    %325 = vmatpush1.bf16.msra.mxu0 0
    %326 = vmatprep.subr.bf16.mxu0 0
    %327 = vmatpush1.bf16.msra.mxu0 0
    %328 = vmatprep.subr.bf16.mxu0 0
    %329 = vmatpush1.bf16.msra.mxu0 0
    %330 = vmatprep.subr.bf16.mxu0 0
    %331 = vmatpush1.bf16.msra.mxu0 0
    %332 = vmatprep.subr.bf16.mxu0 0
    %333 = vmatpush1.bf16.msra.mxu0 0
    %334 = vmatprep.subr.bf16.mxu0 0
    %335 = vmatpush1.bf16.msra.mxu0 0
    %336 = vmatprep.subr.bf16.mxu0 0
    %337 = vmatpush1.bf16.msra.mxu0 0
    %338 = vmatprep.subr.bf16.mxu0 0
    %339 = vmatpush1.bf16.msra.mxu0 0
    %340 = vmatprep.subr.bf16.mxu0 0
    %341 = vmatpush1.bf16.msra.mxu0 0
    %342 = vmatprep.subr.bf16.mxu0 0
    %343 = vmatpush1.bf16.msra.mxu0 0
    %344 = vmatprep.subr.bf16.mxu0 0
    %345 = vmatpush1.bf16.msra.mxu0 0
    %346 = vmatprep.subr.bf16.mxu0 0
    %347 = vmatpush1.bf16.msra.mxu0 0
    %348 = vmatprep.subr.bf16.mxu0 0
    %349 = vmatpush1.bf16.msra.mxu0 0
    %350 = vmatprep.subr.bf16.mxu0 0
    %351 = vmatpush1.bf16.msra.mxu0 0
    %352 = vmatprep.mubr.bf16.mxu0 0
    %353 = vmatmul.mubr.bf16.gmra.mrb[0].mxu0 %v315
    %v354 = vpop.f32.mrb[0].mxu0
    %v355 = vadd.f32 0.0, %v354
    %v356 = vpop.f32.mrb[0].mxu0
    %v357 = vpop.f32.mrb[0].mxu0
    %v358 = vadd.f32 0.0, %v357
    %v359 = vpop.f32.mrb[0].mxu0
    %360 = vmatprep.mubr.bf16.mxu0 0
    %361 = vmatmul.mubr.bf16.gmra.mrb[0].mxu0 %v318
    %v362 = vpop.f32.mrb[0].mxu0
    %v363 = vadd.f32 0.0, %v362
    %v364 = vpop.f32.mrb[0].mxu0
    %v365 = vpop.f32.mrb[0].mxu0
    %v366 = vadd.f32 0.0, %v365
    %v367 = vpop.f32.mrb[0].mxu0
    %368 = vdwg.mxu0
    %v369 = vadd.f32 %v254, %v355
    %v370 = vadd.f32 %v257, %v358
    %v371 = vadd.f32 %v262, %v363
    %v372 = vadd.f32 %v265, %v366
    %v373 = vld [vmem:[%s0 + $0x8] sm:$0x3]
    %v374 = vld [vmem:[%s0 + $0x14] sm:$0x3]
    %vm375 = vsmask.f32 2304
    %vm376 = vsmask.f32 6416
    %vm377 = vmor %vm375, %vm376
    %v379 = vshrl.u32 %v268, 16
    %v381 = vrot.slane %v379, 5
    %v382 = vshll.u32 %v268, 16
    %v384 = vrot.slane %v382, 6
    %v385 = vor.u32 %v381, %v384
    %v386 = vrot.slane %v385, 4
    %v387 = vrot.slane %v78, 5
    %v388 = vrot.slane %v74, 6
    %v389 = vor.u32 %v387, %v388
    %v390 = vsel %vm377, %v386, %v389
    %v391 = vrot.slane %v389, 4
    %v393 = vshrl.u32 %v373, 16
    %v395 = vrot.slane %v393, 5
    %v396 = vshll.u32 %v373, 16
    %v398 = vrot.slane %v396, 6
    %v399 = vor.u32 %v395, %v398
    %v400 = vsel %vm377, %v391, %v399
    %v402 = vshrl.u32 %v269, 16
    %v404 = vrot.slane %v402, 5
    %v405 = vshll.u32 %v269, 16
    %v407 = vrot.slane %v405, 6
    %v408 = vor.u32 %v404, %v407
    %v409 = vrot.slane %v408, 4
    %v410 = vrot.slane %v102, 5
    %v411 = vrot.slane %v98, 6
    %v412 = vor.u32 %v410, %v411
    %v413 = vsel %vm377, %v409, %v412
    %v414 = vrot.slane %v412, 4
    %v416 = vshrl.u32 %v374, 16
    %v418 = vrot.slane %v416, 5
    %v419 = vshll.u32 %v374, 16
    %v421 = vrot.slane %v419, 6
    %v422 = vor.u32 %v418, %v421
    %v423 = vsel %vm377, %v414, %v422
    %s424 = scalar_lea.vmem %s1, 48
    %v425 = vld [vmem:[%s424] sm:$0xf]
    %v426 = vld [vmem:[%s424 + $0x4] sm:$0xf]
    %v427 = vld [vmem:[%s424 + $0x8] sm:$0xf]
    %v428 = vld [vmem:[%s424 + $0xc] sm:$0xf]
    %v429 = vunpack.c.l.b16 %v390
    %v430 = vunpack.c.l.b16 %v400
    %v431 = vunpack.c.l.b16 %v413
    %v432 = vunpack.c.l.b16 %v423
    %v433 = vpack.c.b16 %v430, %v429
    %v434 = vpack.c.b16 %v432, %v431
    %v439 = vunpack.c.l.b16 %v425
    %v440 = vunpack.c.l.b16 %v426
    %v441 = vunpack.c.l.b16 %v427
    %v442 = vunpack.c.l.b16 %v428
    %v443 = vpack.c.b16 %v440, %v439
    %v444 = vpack.c.b16 %v442, %v441
    %v448 = vsel %vm135, %v433, 0
    %v451 = vsel %vm135, %v434, 0
    %453 = vmatprep.subr.bf16.mxu0 0
    %454 = vmatpush1.bf16.msra.mxu0 %v443
    %455 = vmatprep.subr.bf16.mxu0 0
    %456 = vmatpush1.bf16.msra.mxu0 %v444
    %457 = vmatprep.subr.bf16.mxu0 0
    %458 = vmatpush1.bf16.msra.mxu0 0
    %459 = vmatprep.subr.bf16.mxu0 0
    %460 = vmatpush1.bf16.msra.mxu0 0
    %461 = vmatprep.subr.bf16.mxu0 0
    %462 = vmatpush1.bf16.msra.mxu0 0
    %463 = vmatprep.subr.bf16.mxu0 0
    %464 = vmatpush1.bf16.msra.mxu0 0
    %465 = vmatprep.subr.bf16.mxu0 0
    %466 = vmatpush1.bf16.msra.mxu0 0
    %467 = vmatprep.subr.bf16.mxu0 0
    %468 = vmatpush1.bf16.msra.mxu0 0
    %469 = vmatprep.subr.bf16.mxu0 0
    %470 = vmatpush1.bf16.msra.mxu0 0
    %471 = vmatprep.subr.bf16.mxu0 0
    %472 = vmatpush1.bf16.msra.mxu0 0
    %473 = vmatprep.subr.bf16.mxu0 0
    %474 = vmatpush1.bf16.msra.mxu0 0
    %475 = vmatprep.subr.bf16.mxu0 0
    %476 = vmatpush1.bf16.msra.mxu0 0
    %477 = vmatprep.subr.bf16.mxu0 0
    %478 = vmatpush1.bf16.msra.mxu0 0
    %479 = vmatprep.subr.bf16.mxu0 0
    %480 = vmatpush1.bf16.msra.mxu0 0
    %481 = vmatprep.subr.bf16.mxu0 0
    %482 = vmatpush1.bf16.msra.mxu0 0
    %483 = vmatprep.subr.bf16.mxu0 0
    %484 = vmatpush1.bf16.msra.mxu0 0
    %485 = vmatprep.mubr.bf16.mxu0 0
    %486 = vmatmul.mubr.bf16.gmra.mrb[0].mxu0 %v448
    %v487 = vpop.f32.mrb[0].mxu0
    %v488 = vadd.f32 0.0, %v487
    %v489 = vpop.f32.mrb[0].mxu0
    %v490 = vpop.f32.mrb[0].mxu0
    %v491 = vadd.f32 0.0, %v490
    %v492 = vpop.f32.mrb[0].mxu0
    %493 = vmatprep.mubr.bf16.mxu0 0
    %494 = vmatmul.mubr.bf16.gmra.mrb[0].mxu0 %v451
    %v495 = vpop.f32.mrb[0].mxu0
    %v496 = vadd.f32 0.0, %v495
    %v497 = vpop.f32.mrb[0].mxu0
    %v498 = vpop.f32.mrb[0].mxu0
    %v499 = vadd.f32 0.0, %v498
    %v500 = vpop.f32.mrb[0].mxu0
    %501 = vdwg.mxu0
    %v502 = vadd.f32 %v369, %v488
    %v503 = vadd.f32 %v370, %v491
    %v504 = vadd.f32 %v371, %v496
    %v505 = vadd.f32 %v372, %v499
    %v506 = vld [vmem:[%s0] sm:$0xc]
    %v507 = vld [vmem:[%s0 + $0xc] sm:$0xc]
    %vm512 = vcmask 1041408
    %vm513 = vcmask 1045508
    %vm514 = vmor %vm512, %vm513
    %v515 = vrot.slane %v506, 6
    %v516 = vrot.slane %v515, 4
    %v517 = vrot.slane %v52, 6
    %v518 = vsel %vm514, %v516, %v517
    %v519 = vrot.slane %v517, 4
    %v520 = vrot.slane %v373, 6
    %v521 = vsel %vm514, %v519, %v520
    %v522 = vrot.slane %v507, 6
    %v523 = vrot.slane %v522, 4
    %v524 = vrot.slane %v54, 6
    %v525 = vsel %vm514, %v523, %v524
    %v526 = vrot.slane %v524, 4
    %v527 = vrot.slane %v374, 6
    %v528 = vsel %vm514, %v526, %v527
    %s529 = scalar_lea.vmem %s1, 64
    %v530 = vld [vmem:[%s529] sm:$0xf]
    %v531 = vld [vmem:[%s529 + $0x4] sm:$0xf]
    %v532 = vld [vmem:[%s529 + $0x8] sm:$0xf]
    %v533 = vld [vmem:[%s529 + $0xc] sm:$0xf]
    %v534 = vunpack.c.l.b16 %v518
    %v535 = vunpack.c.l.b16 %v521
    %v536 = vunpack.c.l.b16 %v525
    %v537 = vunpack.c.l.b16 %v528
    %v538 = vpack.c.b16 %v535, %v534
    %v539 = vpack.c.b16 %v537, %v536
    %v544 = vunpack.c.l.b16 %v530
    %v545 = vunpack.c.l.b16 %v531
    %v546 = vunpack.c.l.b16 %v532
    %v547 = vunpack.c.l.b16 %v533
    %v548 = vpack.c.b16 %v545, %v544
    %v549 = vpack.c.b16 %v547, %v546
    %v553 = vsel %vm135, %v538, 0
    %v556 = vsel %vm135, %v539, 0
    %558 = vmatprep.subr.bf16.mxu0 0
    %559 = vmatpush1.bf16.msra.mxu0 %v548
    %560 = vmatprep.subr.bf16.mxu0 0
    %561 = vmatpush1.bf16.msra.mxu0 %v549
    %562 = vmatprep.subr.bf16.mxu0 0
    %563 = vmatpush1.bf16.msra.mxu0 0
    %564 = vmatprep.subr.bf16.mxu0 0
    %565 = vmatpush1.bf16.msra.mxu0 0
    %566 = vmatprep.subr.bf16.mxu0 0
    %567 = vmatpush1.bf16.msra.mxu0 0
    %568 = vmatprep.subr.bf16.mxu0 0
    %569 = vmatpush1.bf16.msra.mxu0 0
    %570 = vmatprep.subr.bf16.mxu0 0
    %571 = vmatpush1.bf16.msra.mxu0 0
    %572 = vmatprep.subr.bf16.mxu0 0
    %573 = vmatpush1.bf16.msra.mxu0 0
    %574 = vmatprep.subr.bf16.mxu0 0
    %575 = vmatpush1.bf16.msra.mxu0 0
    %576 = vmatprep.subr.bf16.mxu0 0
    %577 = vmatpush1.bf16.msra.mxu0 0
    %578 = vmatprep.subr.bf16.mxu0 0
    %579 = vmatpush1.bf16.msra.mxu0 0
    %580 = vmatprep.subr.bf16.mxu0 0
    %581 = vmatpush1.bf16.msra.mxu0 0
    %582 = vmatprep.subr.bf16.mxu0 0
    %583 = vmatpush1.bf16.msra.mxu0 0
    %584 = vmatprep.subr.bf16.mxu0 0
    %585 = vmatpush1.bf16.msra.mxu0 0
    %586 = vmatprep.subr.bf16.mxu0 0
    %587 = vmatpush1.bf16.msra.mxu0 0
    %588 = vmatprep.subr.bf16.mxu0 0
    %589 = vmatpush1.bf16.msra.mxu0 0
    %590 = vmatprep.mubr.bf16.mxu0 0
    %591 = vmatmul.mubr.bf16.gmra.mrb[0].mxu0 %v553
    %v592 = vpop.f32.mrb[0].mxu0
    %v593 = vadd.f32 0.0, %v592
    %v594 = vpop.f32.mrb[0].mxu0
    %v595 = vpop.f32.mrb[0].mxu0
    %v596 = vadd.f32 0.0, %v595
    %v597 = vpop.f32.mrb[0].mxu0
    %598 = vmatprep.mubr.bf16.mxu0 0
    %599 = vmatmul.mubr.bf16.gmra.mrb[0].mxu0 %v556
    %v600 = vpop.f32.mrb[0].mxu0
    %v601 = vadd.f32 0.0, %v600
    %v602 = vpop.f32.mrb[0].mxu0
    %v603 = vpop.f32.mrb[0].mxu0
    %v604 = vadd.f32 0.0, %v603
    %v605 = vpop.f32.mrb[0].mxu0
    %606 = vdwg.mxu0
    %v607 = vadd.f32 %v502, %v593
    %v608 = vadd.f32 %v503, %v596
    %v609 = vadd.f32 %v504, %v601
    %v610 = vadd.f32 %v505, %v604
    %v611 = vld [vmem:[#allocation2] sm:$0x1]
    %v613 = vlaneseq
    %v614 = vshrl.u32 %v613, 7
    %v615 = vsub.s32 0, %v614
    %v616 = vrot.slane %v611, %v615
    %v618 = vadd.f32 %v607, %v616
    %v619 = vadd.f32 %v608, %v616
    %v620 = vadd.f32 %v609, %v616
    %v621 = vadd.f32 %v610, %v616
    %v622 = vmax.f32 %v618, 0.0
    %v623 = vmax.f32 %v619, 0.0
    %v624 = vmax.f32 %v620, 0.0
    %v625 = vmax.f32 %v621, 0.0
    %v626 = vld [vmem:[%s3] sm:$0xff]
    %v627 = vld [vmem:[%s3 + $0x8] sm:$0xff]
    %v628 = vmul.f32 %v622, %v626
    %v629 = vmul.f32 %v623, %v627
    %v630 = vmul.f32 %v624, %v626
    %v631 = vmul.f32 %v625, %v627
    %v632 = vmax.f32 %v628, %v629
    %v633 = vrot.slane %v632, 4
    %v634 = vmax.f32 %v632, %v633
    %v635 = vrot.slane %v634, 2
    %v636 = vmax.f32 %v634, %v635
    %v637 = vrot.slane %v636, 1
    %v638 = vmax.f32 %v636, %v637
    %v639 = vmax.f32 %v630, %v631
    %v640 = vrot.slane %v639, 4
    %v641 = vmax.f32 %v639, %v640
    %v642 = vrot.slane %v641, 2
    %v643 = vmax.f32 %v641, %v642
    %v644 = vrot.slane %v643, 1
    %v645 = vmax.f32 %v643, %v644
    %v646 = vpack.c.bf16 %v638, %v638
    %v647 = vpack.c.bf16 %v645, %v645
    %v648 = vld [vmem:[#allocation5] sm:$0xf]
    %v649 = vld [vmem:[#allocation5 + $0x4] sm:$0xf]
    %v650 = vld [vmem:[#allocation5 + $0x8] sm:$0xf]
    %v651 = vld [vmem:[#allocation5 + $0xc] sm:$0xf]
    %v652 = vld [vmem:[#allocation5 + $0x10] sm:$0xf]
    %v653 = vld [vmem:[#allocation5 + $0x14] sm:$0xf]
    %v654 = vld [vmem:[#allocation5 + $0x18] sm:$0xf]
    %v655 = vld [vmem:[#allocation5 + $0x1c] sm:$0xf]
    %v656 = vld [vmem:[#allocation5 + $0x20] sm:$0xf]
    %v657 = vld [vmem:[#allocation5 + $0x24] sm:$0xf]
    %v658 = vld [vmem:[#allocation5 + $0x28] sm:$0xf]
    %v659 = vld [vmem:[#allocation5 + $0x2c] sm:$0xf]
    %v660 = vld [vmem:[#allocation5 + $0x30] sm:$0xf]
    %v661 = vld [vmem:[#allocation5 + $0x34] sm:$0xf]
    %v662 = vld [vmem:[#allocation5 + $0x38] sm:$0xf]
    %v663 = vld [vmem:[#allocation5 + $0x3c] sm:$0xf]
    %v664 = vld [vmem:[%s5] sm:$0x1]
    %v666 = vlaneseq
    %v667 = vshrl.u32 %v666, 7
    %v668 = vsub.s32 0, %v667
    %v669 = vrot.slane %v664, %v668
    %v673 = vunpack.c.l.b16 %v646
    %v674 = vunpack.c.l.b16 %v647
    %vm675 = vcmask 1041409
    %v676 = vsel %vm675, %v674, %v673
    %v677 = vpack.c.b16 %v676, %v676
    %v695 = vunpack.c.l.b16 %v648
    %v696 = vunpack.c.l.b16 %v649
    %v697 = vunpack.c.l.b16 %v650
    %v698 = vunpack.c.l.b16 %v651
    %v699 = vunpack.c.l.b16 %v652
    %v700 = vunpack.c.l.b16 %v653
    %v701 = vunpack.c.l.b16 %v654
    %v702 = vunpack.c.l.b16 %v655
    %v703 = vunpack.c.l.b16 %v656
    %v704 = vunpack.c.l.b16 %v657
    %v705 = vunpack.c.l.b16 %v658
    %v706 = vunpack.c.l.b16 %v659
    %v707 = vunpack.c.l.b16 %v660
    %v708 = vunpack.c.l.b16 %v661
    %v709 = vunpack.c.l.b16 %v662
    %v710 = vunpack.c.l.b16 %v663
    %v711 = vpack.c.b16 %v696, %v695
    %v712 = vpack.c.b16 %v698, %v697
    %v713 = vpack.c.b16 %v700, %v699
    %v714 = vpack.c.b16 %v702, %v701
    %v715 = vpack.c.b16 %v704, %v703
    %v716 = vpack.c.b16 %v706, %v705
    %v717 = vpack.c.b16 %v708, %v707
    %v718 = vpack.c.b16 %v710, %v709
    %727 = vmatprep.subr.bf16.mxu0 0
    %728 = vmatpush1.bf16.msra.mxu0 %v711
    %729 = vmatprep.subr.bf16.mxu0 0
    %730 = vmatpush1.bf16.msra.mxu0 %v712
    %731 = vmatprep.subr.bf16.mxu0 0
    %732 = vmatpush1.bf16.msra.mxu0 %v713
    %733 = vmatprep.subr.bf16.mxu0 0
    %734 = vmatpush1.bf16.msra.mxu0 %v714
    %735 = vmatprep.subr.bf16.mxu0 0
    %736 = vmatpush1.bf16.msra.mxu0 %v715
    %737 = vmatprep.subr.bf16.mxu0 0
    %738 = vmatpush1.bf16.msra.mxu0 %v716
    %739 = vmatprep.subr.bf16.mxu0 0
    %740 = vmatpush1.bf16.msra.mxu0 %v717
    %741 = vmatprep.subr.bf16.mxu0 0
    %742 = vmatpush1.bf16.msra.mxu0 %v718
    %743 = vmatprep.subr.bf16.mxu0 0
    %744 = vmatpush1.bf16.msra.mxu0 0
    %745 = vmatprep.subr.bf16.mxu0 0
    %746 = vmatpush1.bf16.msra.mxu0 0
    %747 = vmatprep.subr.bf16.mxu0 0
    %748 = vmatpush1.bf16.msra.mxu0 0
    %749 = vmatprep.subr.bf16.mxu0 0
    %750 = vmatpush1.bf16.msra.mxu0 0
    %751 = vmatprep.subr.bf16.mxu0 0
    %752 = vmatpush1.bf16.msra.mxu0 0
    %753 = vmatprep.subr.bf16.mxu0 0
    %754 = vmatpush1.bf16.msra.mxu0 0
    %755 = vmatprep.subr.bf16.mxu0 0
    %756 = vmatpush1.bf16.msra.mxu0 0
    %757 = vmatprep.subr.bf16.mxu0 0
    %758 = vmatpush1.bf16.msra.mxu0 0
    %759 = vmatprep.mubr.bf16.mxu0 0
    %760 = vmatmul.mubr.bf16.gmra.mrb[0].mxu0 %v677
    %v761 = vpop.f32.mrb[0].mxu0
    %v762 = vadd.f32 %v669, %v761
    %v763 = vpop.f32.mrb[0].mxu0
    %v764 = vpop.f32.mrb[0].mxu0
    %v765 = vpop.f32.mrb[0].mxu0
    %766 = vdwg.mxu0
    %767 = vst [vmem:[#allocation7] sm:$0x3] %v762
    // Predicated region
    $region34: #{model_forward.1} parent=1 // pred_check
      _
    $region35: #{model_forward.1} parent=1 // pred_check_branch
      %769 = sbr.rel (0) target = $region37
    $region36: #{model_forward.1} parent=1 // pred_region
      %s771 = ssub.s32 32, 32
      %772 = vsyncadd [#allocation4], %s771
      %s774 = sshll.u32 [#allocation7], 4
      %s775 = int_to_ptr.vmem [resolvable:$true] %s774
      %777 = dma.vmem_to_hbm [thread:$0]  %s775, 32, %s6, [#allocation4]
    $region37: #{model_forward.1} parent=1 // pred_fallthru
      _
    // Predicated region
    $region38: #{model_forward.1} parent=1 // pred_check
      _
    $region39: #{model_forward.1} parent=1 // pred_check_branch
      %779 = sbr.rel (0) target = $region41
    $region40: #{model_forward.1} parent=1 // pred_region
      %780 = dma.done [#allocation4], 32
    $region41: #{model_forward.1} parent=1 // pred_fallthru
      _
    %781 = vsyncpa [#allocation3], 1
    %782 = vsyncpa [#allocation6], 1
    %783 = vsyncpa [#allocation4], 1

</llo_original>
